<compile_context>
chip_gen: v7x
topology: tpu7x:2x2x1
jax: 0.10.0
libtpu: 0.0.40
codegen_flags: <defaults>
</compile_context>

<pallas_src>
import math
from functools import partial

import jax
import jax.numpy as jnp
from jax import lax
from jax.experimental import pallas as pl
from jax.experimental.pallas import tpu as pltpu


# ----------------------------------------------------------------------------
# Fused kernel: Conv1d(same pad) + tanh -> label attention -> logits -> BCE
# ----------------------------------------------------------------------------
def _cnn_fused_kernel(B, L, fs, pad, x_ref, cw_ref, cb_ref, uf_ref, fb_ref,
                      tgt_ref, out_ref):
    # x_ref  : (B*L, E)    embedded tokens, batch folded into the row dim
    # cw_ref : (fs*E, F)   conv weight, tap-major rows (row = k*E + e)
    # cb_ref : (1, F)      conv bias
    # uf_ref : (2Y, F)     [U.weight ; final.weight] concatenated
    # fb_ref : (1, Y)      final.bias
    # tgt_ref: (B, Y)      targets
    # out_ref: (2B, Y)     rows [0:B) = logits, rows [B:2B) = per-elem BCE
    M, E = x_ref.shape
    Y = fb_ref.shape[1]
    x = x_ref[...].astype(jnp.float32)                                # (M, E)

    # ---- Conv1d(padding=fs//2) via in-VMEM im2col: one K=fs*E MXU matmul ----
    # position of each row within its sequence; mod L keeps shifted taps from
    # bleeding across batch boundaries.
    pos = lax.broadcasted_iota(jnp.int32, (M, E), 0) % L
    taps = []
    for k in range(fs):                         # fs is tiny -> static unroll
        s = k - pad
        if s == 0:
            taps.append(x)
        else:
            xs = pltpu.roll(x, shift=(-s) % M, axis=0)   # xs[t] = x[t + s]
            mask = (pos < L - s) if s > 0 else (pos >= -s)
            taps.append(jnp.where(mask, xs, 0.0))
    xcat = jnp.concatenate(taps, axis=1)                              # (M, fs*E)
    feat = jnp.tanh(jnp.dot(xcat, cw_ref[...],
                            preferred_element_type=jnp.float32)
                    + cb_ref[...])                                    # (M, F)

    # ---- label attention + final projection in a single MXU dot ------------
    # ap[:, :Y] = feat @ U^T (attention scores); ap[:, Y:] = feat @ final^T
    ap = lax.dot_general(feat, uf_ref[...].astype(jnp.float32),
                         (((1,), (1,)), ((), ())),
                         preferred_element_type=jnp.float32)          # (M, 2Y)
    attT = ap[:, :Y].reshape(B, L, Y)                                 # (B, L, Y)
    proj = ap[:, Y:].reshape(B, L, Y)                                 # (B, L, Y)

    # softmax over L per batch row (sublane reduces in this layout)
    attT = attT - jnp.max(attT, axis=1, keepdims=True)
    e = jnp.exp(attT)
    alpha = e / jnp.sum(e, axis=1, keepdims=True)                     # exact
    logits = jnp.sum(alpha * proj, axis=1) + fb_ref[...]              # (B, Y)

    # ---- BCE-with-logits (stable form), per element -------------------------
    z = tgt_ref[...].astype(jnp.float32)                              # (B, Y)
    bce = (jnp.maximum(logits, 0.0) - logits * z
           + jnp.log1p(jnp.exp(-jnp.abs(logits))))

    # single lane-dense combined store
    out_ref[...] = jnp.concatenate([logits, bce], axis=0).astype(out_ref.dtype)


def cnn_forward(params, x_tokens, target):
    """Returns (logits (B, Y), mean BCEWithLogits loss) matching CNN.forward (eval)."""
    # WordRep: embedding gather (padding_idx row zeroed) + identity dropout in
    # eval mode.
    # TODO(synk): at production L/E, fuse this gather into the kernel via
    # PrefetchScalarGridSpec + a pl.Element row-gather BlockSpec (or a manual
    # DMA gather) to avoid one HBM write+read of (B, L, E); at (2, 16, 32) it
    # is negligible and would reintroduce a per-row grid.
    emb = jnp.take(params["embed"], x_tokens, axis=0)                  # (B, L, E)
    B, L, E = emb.shape
    fs, _, F = params["conv_w"].shape
    Y = params["u_w"].shape[0]
    assert fs % 2 == 1, "PyTorch padding=fs//2 only preserves L for odd filter sizes"

    x2d = emb.reshape(B * L, E)                        # fold batch into M
    cw2d = params["conv_w"].reshape(fs * E, F)         # tap-major im2col weight
    cb = params["conv_b"].reshape(1, F)
    uf = jnp.concatenate([params["u_w"], params["f_w"]], axis=0)       # (2Y, F)
    fb = params["f_b"].reshape(1, Y)

    # Single invocation (no grid): all (tiny) operands live fully in VMEM; the
    # working set is ~30 KB, far under any generation's VMEM limit (64 MiB on
    # v7x); re-derive tiling only if B*L / E / F scale up.
    out = pl.pallas_call(
        partial(_cnn_fused_kernel, B, L, fs, fs // 2),
        out_shape=jax.ShapeDtypeStruct((2 * B, Y), jnp.float32),
    )(x2d, cw2d, cb, uf, fb, target.astype(jnp.float32))

    logits = out[:B]
    loss = jnp.mean(out[B:])           # mean over B*Y: one tiny XLA reduce
    # The reference CNN.forward unpacks 4 values (y, loss, alpha, feat) from
    # OutputLayer, which only returns (logits, loss); we return (logits, loss)
    # and do not materialize alpha/feat to avoid extra HBM outputs.
    return logits, loss


# ----------------------------------------------------------------------------
# Parameter init (deterministic; mirrors the PyTorch module's shapes/inits)
# ----------------------------------------------------------------------------
def xavier_uniform(key, shape, fan_in, fan_out):
    bound = math.sqrt(6.0 / (fan_in + fan_out))
    return jax.random.uniform(key, shape, jnp.float32, -bound, bound)


def init_params(key, vocab, E, F_maps, fs, Y):
    k_emb, k_cw, k_cb, k_u, k_f, k_fb = jax.random.split(key, 6)
    embed = jax.random.normal(k_emb, (vocab, E), jnp.float32)
    embed = embed.at[0].set(0.0)                       # padding_idx=0
    # PyTorch Conv1d weight layout (F, E, fs), xavier_uniform_ init
    w_pt = xavier_uniform(k_cw, (F_maps, E, fs), E * fs, F_maps * fs)
    bb = 1.0 / math.sqrt(E * fs)
    conv_b = jax.random.uniform(k_cb, (F_maps,), jnp.float32, -bb, bb)
    conv_w = jnp.transpose(w_pt, (2, 1, 0))            # -> (fs, E, F) tap-major
    u_w = xavier_uniform(k_u, (Y, F_maps), F_maps, Y)
    f_w = xavier_uniform(k_f, (Y, F_maps), F_maps, Y)
    lb = 1.0 / math.sqrt(F_maps)
    f_b = jax.random.uniform(k_fb, (Y,), jnp.float32, -lb, lb)
    return dict(embed=embed, conv_w=conv_w, conv_b=conv_b,
                u_w=u_w, f_w=f_w, f_b=f_b)


# ----------------------------------------------------------------------------
# Plain-JAX reference for verification
# ----------------------------------------------------------------------------
def reference_forward(params, x_tokens, target):
    emb = jnp.take(params["embed"], x_tokens, axis=0)                  # (B, L, E)
    w, b = params["conv_w"], params["conv_b"]                          # (fs,E,F), (F,)
    fs = w.shape[0]
    pad = fs // 2
    L = emb.shape[1]
    xp = jnp.pad(emb, ((0, 0), (pad, fs - 1 - pad), (0, 0)))
    conv = sum(jnp.einsum("ble,ef->blf", xp[:, k:k + L, :], w[k])
               for k in range(fs)) + b
    feat = jnp.tanh(conv)                                              # (B, L, F)
    att = jnp.einsum("yf,blf->byl", params["u_w"], feat)
    alpha = jax.nn.softmax(att, axis=2)
    m = jnp.einsum("byl,blf->byf", alpha, feat)
    logits = jnp.sum(params["f_w"][None] * m, axis=2) + params["f_b"][None]
    z = target
    bce = (jnp.maximum(logits, 0.0) - logits * z
           + jnp.log1p(jnp.exp(-jnp.abs(logits))))
    return logits, jnp.mean(bce)


if __name__ == "__main__":
    # args: embed_size=32, num_filter_maps=32, filter_size=3,
    #       label_smoothing=False, dropout inactive (eval mode), Y=8
    B, L, E = 2, 16, 32
    vocab, F_maps, Y, fs = 50, 32, 8, 3

    key = jax.random.PRNGKey(0)
    pk, xk, tk = jax.random.split(key, 3)
    params = init_params(pk, vocab, E, F_maps, fs, Y)
    x_tokens = jax.random.randint(xk, (B, L), 1, vocab, jnp.int32)
    target = jax.random.bernoulli(tk, 0.3, (B, Y)).astype(jnp.float32)

    logits, loss = jax.jit(cnn_forward)(params, x_tokens, target)
    jax.block_until_ready((logits, loss))

    ref_logits, ref_loss = reference_forward(params, x_tokens, target)
    assert jnp.allclose(logits, ref_logits, atol=1e-3, rtol=1e-3), "logits mismatch"
    assert jnp.allclose(loss, ref_loss, atol=1e-3, rtol=1e-3), "loss mismatch"

    print("KERNEL_OK")
</pallas_src>

<mosaic_0001>
module attributes {stable_mosaic.version = 11 : i64} {
  func.func @_cnn_fused_kernel(%arg0: memref<32x32xf32, #tpu.memory_space<vmem>>, %arg1: memref<96x32xf32, #tpu.memory_space<vmem>>, %arg2: memref<1x32xf32, #tpu.memory_space<vmem>>, %arg3: memref<16x32xf32, #tpu.memory_space<vmem>>, %arg4: memref<1x8xf32, #tpu.memory_space<vmem>>, %arg5: memref<2x8xf32, #tpu.memory_space<vmem>>, %arg6: memref<4x8xf32, #tpu.memory_space<vmem>>) attributes {dimension_semantics = [], scalar_prefetch = 0 : i64, scratch_operands = 0 : i64, tpu.core_type = #tpu.core_type<tc>} {
    %c0 = arith.constant 0 : index
    %c0_0 = arith.constant 0 : index
    %0 = vector.load %arg0[%c0, %c0_0] : memref<32x32xf32, #tpu.memory_space<vmem>>, vector<32x32xf32>
    %1 = tpu.iota {dimensions = array<i32: 0>} : vector<32x32xi32>
    %c16_i32 = arith.constant 16 : i32
    %c0_i32 = arith.constant 0 : i32
    %2 = arith.cmpi eq, %c16_i32, %c0_i32 : i32
    %c1_i32 = arith.constant 1 : i32
    %3 = arith.select %2, %c1_i32, %c16_i32 : i32
    %4 = vector.broadcast %3 : i32 to vector<32x32xi32>
    %5 = arith.remsi %1, %4 : vector<32x32xi32>
    %c0_i32_1 = arith.constant 0 : i32
    %6 = vector.broadcast %c0_i32_1 : i32 to vector<32x32xi32>
    %7 = arith.cmpi ne, %5, %6 : vector<32x32xi32>
    %c0_i32_2 = arith.constant 0 : i32
    %8 = vector.broadcast %c0_i32_2 : i32 to vector<32x32xi32>
    %9 = arith.cmpi slt, %5, %8 : vector<32x32xi32>
    %c0_i32_3 = arith.constant 0 : i32
    %10 = arith.cmpi slt, %3, %c0_i32_3 : i32
    %11 = vector.broadcast %10 : i1 to vector<32x32xi1>
    %12 = vector.broadcast %11 : vector<32x32xi1> to vector<32x32xi1>
    %13 = arith.xori %9, %12 : vector<32x32xi1>
    %14 = arith.andi %13, %7 : vector<32x32xi1>
    %15 = vector.broadcast %3 : i32 to vector<32x32xi32>
    %16 = arith.addi %5, %15 : vector<32x32xi32>
    %17 = arith.select %14, %16, %5 : vector<32x32xi1>, vector<32x32xi32>
    %c1_i32_4 = arith.constant 1 : i32
    %18 = tpu.dynamic_rotate %0 by %c1_i32_4 dim 0 : vector<32x32xf32>, i32 -> vector<32x32xf32>
    %c1_i32_5 = arith.constant 1 : i32
    %19 = vector.broadcast %c1_i32_5 : i32 to vector<32x32xi32>
    %20 = arith.cmpi sge, %17, %19 : vector<32x32xi32>
    %cst = arith.constant 0.000000e+00 : f32
    %21 = vector.broadcast %cst : f32 to vector<32x32xf32>
    %22 = arith.select %20, %18, %21 : vector<32x32xi1>, vector<32x32xf32>
    %c31_i32 = arith.constant 31 : i32
    %23 = tpu.dynamic_rotate %0 by %c31_i32 dim 0 : vector<32x32xf32>, i32 -> vector<32x32xf32>
    %c15_i32 = arith.constant 15 : i32
    %24 = vector.broadcast %c15_i32 : i32 to vector<32x32xi32>
    %25 = arith.cmpi slt, %17, %24 : vector<32x32xi32>
    %cst_6 = arith.constant 0.000000e+00 : f32
    %26 = vector.broadcast %cst_6 : f32 to vector<32x32xf32>
    %27 = arith.select %25, %23, %26 : vector<32x32xi1>, vector<32x32xf32>
    %28 = tpu.concatenate %22, %0, %27 in 1 : vector<32x32xf32>, vector<32x32xf32>, vector<32x32xf32> -> vector<32x96xf32>
    %c0_7 = arith.constant 0 : index
    %c0_8 = arith.constant 0 : index
    %29 = vector.load %arg1[%c0_7, %c0_8] : memref<96x32xf32, #tpu.memory_space<vmem>>, vector<96x32xf32>
    %cst_9 = arith.constant dense<0.000000e+00> : vector<32x32xf32>
    %30 = tpu.matmul %28, %29, %cst_9 {dimension_numbers = #tpu.dot_dimension_numbers<[1], [0], [0], [1], [0, 0, 1, 1], [], []>} : vector<32x96xf32>, vector<96x32xf32>, vector<32x32xf32> -> vector<32x32xf32>
    %c0_10 = arith.constant 0 : index
    %c0_11 = arith.constant 0 : index
    %31 = vector.load %arg2[%c0_10, %c0_11] : memref<1x32xf32, #tpu.memory_space<vmem>>, vector<1x32xf32>
    %32 = vector.broadcast %31 : vector<1x32xf32> to vector<32x32xf32>
    %33 = arith.addf %30, %32 : vector<32x32xf32>
    %34 = math.tanh %33 : vector<32x32xf32>
    %c0_12 = arith.constant 0 : index
    %c0_13 = arith.constant 0 : index
    %35 = vector.load %arg3[%c0_12, %c0_13] : memref<16x32xf32, #tpu.memory_space<vmem>>, vector<16x32xf32>
    %cst_14 = arith.constant dense<0.000000e+00> : vector<32x16xf32>
    %36 = tpu.matmul %34, %35, %cst_14 {dimension_numbers = #tpu.dot_dimension_numbers<[1], [1], [0], [0], [0, 0, 1, 0], [], []>} : vector<32x32xf32>, vector<16x32xf32>, vector<32x16xf32> -> vector<32x16xf32>
    %37 = vector.extract_strided_slice %36 {offsets = [0, 0], sizes = [32, 8], strides = [1, 1]} : vector<32x16xf32> to vector<32x8xf32>
    %38 = vector.shape_cast %37 : vector<32x8xf32> to vector<2x16x8xf32>
    %39 = vector.extract_strided_slice %36 {offsets = [0, 8], sizes = [32, 8], strides = [1, 1]} : vector<32x16xf32> to vector<32x8xf32>
    %40 = vector.shape_cast %39 : vector<32x8xf32> to vector<2x16x8xf32>
    %cst_15 = arith.constant dense<0xFF800000> : vector<2x8xf32>
    %41 = vector.multi_reduction <maximumf>, %38, %cst_15 [1] : vector<2x16x8xf32> to vector<2x8xf32>
    %42 = vector.shape_cast %41 : vector<2x8xf32> to vector<2x1x8xf32>
    %43 = vector.broadcast %42 : vector<2x1x8xf32> to vector<2x16x8xf32>
    %44 = arith.subf %38, %43 : vector<2x16x8xf32>
    %45 = math.exp %44 : vector<2x16x8xf32>
    %cst_16 = arith.constant dense<0.000000e+00> : vector<2x8xf32>
    %46 = vector.multi_reduction <add>, %45, %cst_16 [1] : vector<2x16x8xf32> to vector<2x8xf32>
    %47 = vector.shape_cast %46 : vector<2x8xf32> to vector<2x1x8xf32>
    %48 = vector.broadcast %47 : vector<2x1x8xf32> to vector<2x16x8xf32>
    %49 = arith.divf %45, %48 : vector<2x16x8xf32>
    %50 = arith.mulf %49, %40 : vector<2x16x8xf32>
    %cst_17 = arith.constant dense<0.000000e+00> : vector<2x8xf32>
    %51 = vector.multi_reduction <add>, %50, %cst_17 [1] : vector<2x16x8xf32> to vector<2x8xf32>
    %c0_18 = arith.constant 0 : index
    %c0_19 = arith.constant 0 : index
    %52 = vector.load %arg4[%c0_18, %c0_19] : memref<1x8xf32, #tpu.memory_space<vmem>>, vector<1x8xf32>
    %53 = vector.broadcast %52 : vector<1x8xf32> to vector<2x8xf32>
    %54 = arith.addf %51, %53 : vector<2x8xf32>
    %c0_20 = arith.constant 0 : index
    %c0_21 = arith.constant 0 : index
    %55 = vector.load %arg5[%c0_20, %c0_21] : memref<2x8xf32, #tpu.memory_space<vmem>>, vector<2x8xf32>
    %cst_22 = arith.constant 0.000000e+00 : f32
    %56 = vector.broadcast %cst_22 : f32 to vector<2x8xf32>
    %57 = arith.maximumf %54, %56 : vector<2x8xf32>
    %58 = arith.mulf %54, %55 : vector<2x8xf32>
    %59 = arith.subf %57, %58 : vector<2x8xf32>
    %60 = math.absf %54 : vector<2x8xf32>
    %cst_23 = arith.constant 0.000000e+00 : f32
    %61 = vector.broadcast %cst_23 : f32 to vector<2x8xf32>
    %62 = arith.subf %61, %60 : vector<2x8xf32>
    %63 = math.exp %62 : vector<2x8xf32>
    %64 = math.log1p %63 : vector<2x8xf32>
    %65 = arith.addf %59, %64 : vector<2x8xf32>
    %66 = tpu.concatenate %54, %65 in 0 : vector<2x8xf32>, vector<2x8xf32> -> vector<4x8xf32>
    %c0_24 = arith.constant 0 : index
    %c0_25 = arith.constant 0 : index
    %67 = vector.load %arg6[%c0_24, %c0_25] : memref<4x8xf32, #tpu.memory_space<vmem>>, vector<4x8xf32>
    tpu.vector_store %arg6[%c0_24, %c0_25], %66 {strides = array<i32>} : memref<4x8xf32, #tpu.memory_space<vmem>>, vector<4x8xf32>,
    return
  }
}

</mosaic_0001>

<llo_original>
// kernel: cnn_forward.1
$region0: #{cnn_forward.1}
  #allocation0 [shape = 'u32[]', space=smem, size = 0x4, offset = 0x4, fixed_abs, tag = 'smem constant byte address 0x4 - core index']
  #allocation1 [shape = 'u32[144,128]{1,0:T(1,128)}', space=vmem, size = 0x12000, scoped, tag = 'internal scratch']
  %s0 = inlined_call_operand.vmem [shape: f32[32,32], index: 0, kind: input, shape index: {}]
  %s1 = inlined_call_operand.vmem [shape: f32[96,32], index: 1, kind: input, shape index: {}]
  %s2 = inlined_call_operand.vmem [shape: f32[1,32], index: 2, kind: input, shape index: {}]
  %s3 = inlined_call_operand.vmem [shape: f32[16,32], index: 3, kind: input, shape index: {}]
  %s4 = inlined_call_operand.vmem [shape: f32[1,8], index: 4, kind: input, shape index: {}]
  %s5 = inlined_call_operand.vmem [shape: f32[2,8], index: 5, kind: input, shape index: {}]
  %s6 = inlined_call_operand.vmem [shape: f32[4,8], index: 6, kind: output, shape index: {}]
  %s7 = sld [smem:[#allocation0]]
  $region34: #{cnn_forward.1} parent=0
    _
  %s9 = ssub.s32 1, %s7
  %s10 = scalar_select 0, %s9, %s7
  // Predicated region
  $region2: #{cnn_forward.1} parent=0 // pred_check
    _
  $region3: #{cnn_forward.1} parent=0 // pred_check_branch
    %12 = sbr.rel (0) target = $region5
  $region4: #{cnn_forward.1} parent=0 // pred_region
    _
  $region5: #{cnn_forward.1} parent=0 // pred_fallthru
    _
  // Predicated region
  $region6: #{cnn_forward.1} parent=0 // pred_check
    _
  $region7: #{cnn_forward.1} parent=0 // pred_check_branch
    %14 = sbr.rel (0) target = $region9
  $region8: #{cnn_forward.1} parent=0 // pred_region
    _
  $region9: #{cnn_forward.1} parent=0 // pred_fallthru
    _
  // Predicated region
  $region10: #{cnn_forward.1} parent=0 // pred_check
    _
  $region11: #{cnn_forward.1} parent=0 // pred_check_branch
    %16 = sbr.rel (0) target = $region13
  $region12: #{cnn_forward.1} parent=0 // pred_region
    _
  $region13: #{cnn_forward.1} parent=0 // pred_fallthru
    _
  // Predicated region
  $region14: #{cnn_forward.1} parent=0 // pred_check
    _
  $region15: #{cnn_forward.1} parent=0 // pred_check_branch
    %18 = sbr.rel (0) target = $region17
  $region16: #{cnn_forward.1} parent=0 // pred_region
    _
  $region17: #{cnn_forward.1} parent=0 // pred_fallthru
    _
  // Predicated region
  $region18: #{cnn_forward.1} parent=0 // pred_check
    _
  $region19: #{cnn_forward.1} parent=0 // pred_check_branch
    %20 = sbr.rel (0) target = $region21
  $region20: #{cnn_forward.1} parent=0 // pred_region
    _
  $region21: #{cnn_forward.1} parent=0 // pred_fallthru
    _
  // Predicated region
  $region22: #{cnn_forward.1} parent=0 // pred_check
    _
  $region23: #{cnn_forward.1} parent=0 // pred_check_branch
    %22 = sbr.rel (0) target = $region25
  $region24: #{cnn_forward.1} parent=0 // pred_region
    _
  $region25: #{cnn_forward.1} parent=0 // pred_fallthru
    _
  %v23 = vld [vmem:[%s0] sm:$0xff]
  %v24 = vld [vmem:[%s0 + $0x8] sm:$0xff]
  %v25 = vld [vmem:[%s0 + $0x10] sm:$0xff]
  %v26 = vld [vmem:[%s0 + $0x18] sm:$0xff]
  %v27 = vlaneseq
  %v28 = vshrl.u32 %v27, 7
  %v29 = vadd.s32 %v28, 8
  %v30 = vadd.s32 %v28, 16
  %v31 = vadd.s32 %v28, 24
  %vm32 = vcmp.lt.s32.totalorder %v28, 0
  %v33 = vsub.s32 0, %v28
  %v34 = vsel %vm32, %v33, %v28
  %v35 = vshrl.u32 %v34, 4
  %v36 = vand.u32 %v34, 15
  %v37 = vsub.s32 0, %v36
  %v38 = vsel %vm32, %v37, %v36
  %vm39 = vcmp.lt.s32.totalorder %v29, 0
  %v40 = vsub.s32 0, %v29
  %v41 = vsel %vm39, %v40, %v29
  %v42 = vshrl.u32 %v41, 4
  %v43 = vand.u32 %v41, 15
  %v44 = vsub.s32 0, %v43
  %v45 = vsel %vm39, %v44, %v43
  %vm46 = vcmp.lt.s32.totalorder %v30, 0
  %v47 = vsub.s32 0, %v30
  %v48 = vsel %vm46, %v47, %v30
  %v49 = vshrl.u32 %v48, 4
  %v50 = vand.u32 %v48, 15
  %v51 = vsub.s32 0, %v50
  %v52 = vsel %vm46, %v51, %v50
  %vm53 = vcmp.lt.s32.totalorder %v31, 0
  %v54 = vsub.s32 0, %v31
  %v55 = vsel %vm53, %v54, %v31
  %v56 = vshrl.u32 %v55, 4
  %v57 = vand.u32 %v55, 15
  %v58 = vsub.s32 0, %v57
  %v59 = vsel %vm53, %v58, %v57
  %vm60 = vcmp.ne.s32.totalorder %v38, 0
  %vm61 = vcmp.ne.s32.totalorder %v45, 0
  %vm62 = vcmp.ne.s32.totalorder %v52, 0
  %vm63 = vcmp.ne.s32.totalorder %v59, 0
  %vm64 = vcmp.lt.s32.totalorder %v38, 0
  %vm65 = vcmp.lt.s32.totalorder %v45, 0
  %vm66 = vcmp.lt.s32.totalorder %v52, 0
  %vm67 = vcmp.lt.s32.totalorder %v59, 0
  %vm68 = vmand %vm64, %vm60
  %vm69 = vmand %vm65, %vm61
  %vm70 = vmand %vm66, %vm62
  %vm71 = vmand %vm67, %vm63
  %v72 = vadd.s32 %v38, 16
  %v73 = vadd.s32 %v45, 16
  %v74 = vadd.s32 %v52, 16
  %v75 = vadd.s32 %v59, 16
  %v76 = vsel %vm68, %v72, %v38
  %v77 = vsel %vm69, %v73, %v45
  %v78 = vsel %vm70, %v74, %v52
  %v79 = vsel %vm71, %v75, %v59
  %v80 = vrot.slane %v23, 7
  %v81 = vrot.slane %v24, 7
  %v82 = vrot.slane %v25, 7
  %v83 = vrot.slane %v26, 7
  %vm84 = vcmp.lt.s32.totalorder %v28, 1
  %v85 = vsel %vm84, %v82, %v83
  %v86 = vsel %vm84, %v81, %v82
  %v87 = vsel %vm84, %v80, %v81
  %v88 = vsel %vm84, %v83, %v80
  %vm89 = vcmp.ge.s32.totalorder %v76, 1
  %vm90 = vcmp.ge.s32.totalorder %v77, 1
  %vm91 = vcmp.ge.s32.totalorder %v78, 1
  %vm92 = vcmp.ge.s32.totalorder %v79, 1
  %v93 = vsel %vm89, %v88, 0.0
  %v94 = vsel %vm90, %v87, 0.0
  %v95 = vsel %vm91, %v86, 0.0
  %v96 = vsel %vm92, %v85, 0.0
  %v97 = vrot.slane %v23, 1
  %v98 = vrot.slane %v24, 1
  %v99 = vrot.slane %v25, 1
  %v100 = vrot.slane %v26, 1
  %vm101 = vcmp.lt.s32.totalorder %v28, 7
  %v102 = vsel %vm101, %v99, %v100
  %v103 = vsel %vm101, %v98, %v99
  %v104 = vsel %vm101, %v97, %v98
  %v105 = vsel %vm101, %v100, %v97
  %vm106 = vcmp.lt.s32.totalorder %v76, 15
  %vm107 = vcmp.lt.s32.totalorder %v77, 15
  %vm108 = vcmp.lt.s32.totalorder %v78, 15
  %vm109 = vcmp.lt.s32.totalorder %v79, 15
  %v110 = vsel %vm106, %v104, 0.0
  %v111 = vsel %vm107, %v103, 0.0
  %v112 = vsel %vm108, %v102, 0.0
  %v113 = vsel %vm109, %v105, 0.0
  %118 = vrot.lane.b32.xlu0 %v23, 32
  %v119 = vpop.permute.xlu0 %118
  %120 = vrot.lane.b32.xlu0 %v24, 32
  %v121 = vpop.permute.xlu0 %120
  %122 = vrot.lane.b32.xlu0 %v25, 32
  %v123 = vpop.permute.xlu0 %122
  %124 = vrot.lane.b32.xlu0 %v26, 32
  %v125 = vpop.permute.xlu0 %124
  %134 = vrot.lane.b32.xlu0 %v110, 64
  %v135 = vpop.permute.xlu0 %134
  %136 = vrot.lane.b32.xlu0 %v111, 64
  %v137 = vpop.permute.xlu0 %136
  %138 = vrot.lane.b32.xlu0 %v112, 64
  %v139 = vpop.permute.xlu0 %138
  %140 = vrot.lane.b32.xlu0 %v113, 64
  %v141 = vpop.permute.xlu0 %140
  %vm146 = vcmask 261120
  %v147 = vsel %vm146, %v93, %v119
  %v148 = vsel %vm146, %v94, %v121
  %v149 = vsel %vm146, %v95, %v123
  %v150 = vsel %vm146, %v96, %v125
  %vm151 = vcmask 523264
  %v152 = vsel %vm151, %v147, %v135
  %v153 = vsel %vm151, %v148, %v137
  %v154 = vsel %vm151, %v149, %v139
  %v155 = vsel %vm151, %v150, %v141
  %v156 = vld [vmem:[%s1] sm:$0xff]
  %v157 = vld [vmem:[%s1 + $0x8] sm:$0xff]
  %v158 = vld [vmem:[%s1 + $0x10] sm:$0xff]
  %v159 = vld [vmem:[%s1 + $0x18] sm:$0xff]
  %v160 = vld [vmem:[%s1 + $0x20] sm:$0xff]
  %v161 = vld [vmem:[%s1 + $0x28] sm:$0xff]
  %v162 = vld [vmem:[%s1 + $0x30] sm:$0xff]
  %v163 = vld [vmem:[%s1 + $0x38] sm:$0xff]
  %v164 = vld [vmem:[%s1 + $0x40] sm:$0xff]
  %v165 = vld [vmem:[%s1 + $0x48] sm:$0xff]
  %v166 = vld [vmem:[%s1 + $0x50] sm:$0xff]
  %v167 = vld [vmem:[%s1 + $0x58] sm:$0xff]
  %v168 = vld [vmem:[%s2] sm:$0x1]
  %v170 = vlaneseq
  %v171 = vshrl.u32 %v170, 7
  %v172 = vsub.s32 0, %v171
  %v173 = vrot.slane %v168, %v172
  %vm175 = vcmask 785408
  %v177 = vsel %vm175, %v152, 0
  %v180 = vsel %vm175, %v153, 0
  %v183 = vsel %vm175, %v154, 0
  %v186 = vsel %vm175, %v155, 0
  %188 = vmatprep.subr.mxu0 0.0
  %189 = vmatpush1.msra.mxu0 %v156
  %190 = vmatprep.subr.mxu0 0.0
  %191 = vmatpush1.msra.mxu0 %v157
  %192 = vmatprep.subr.mxu0 0.0
  %193 = vmatpush1.msra.mxu0 %v158
  %194 = vmatprep.subr.mxu0 0.0
  %195 = vmatpush1.msra.mxu0 %v159
  %196 = vmatprep.subr.mxu0 0.0
  %197 = vmatpush1.msra.mxu0 %v160
  %198 = vmatprep.subr.mxu0 0.0
  %199 = vmatpush1.msra.mxu0 %v161
  %200 = vmatprep.subr.mxu0 0.0
  %201 = vmatpush1.msra.mxu0 %v162
  %202 = vmatprep.subr.mxu0 0.0
  %203 = vmatpush1.msra.mxu0 %v163
  %204 = vmatprep.subr.mxu0 0.0
  %205 = vmatpush1.msra.mxu0 %v164
  %206 = vmatprep.subr.mxu0 0.0
  %207 = vmatpush1.msra.mxu0 %v165
  %208 = vmatprep.subr.mxu0 0.0
  %209 = vmatpush1.msra.mxu0 %v166
  %210 = vmatprep.subr.mxu0 0.0
  %211 = vmatpush1.msra.mxu0 %v167
  %212 = vmatprep.subr.mxu0 0.0
  %213 = vmatpush1.msra.mxu0 0.0
  %214 = vmatprep.subr.mxu0 0.0
  %215 = vmatpush1.msra.mxu0 0.0
  %216 = vmatprep.subr.mxu0 0.0
  %217 = vmatpush1.msra.mxu0 0.0
  %218 = vmatprep.subr.mxu0 0.0
  %219 = vmatpush1.msra.mxu0 0.0
  %220 = vmatprep.subr.mxu0 0.0
  %221 = vmatpush1.msra.mxu0 0.0
  %222 = vmatprep.subr.mxu0 0.0
  %223 = vmatpush1.msra.mxu0 0.0
  %224 = vmatprep.subr.mxu0 0.0
  %225 = vmatpush1.msra.mxu0 0.0
  %226 = vmatprep.subr.mxu0 0.0
  %227 = vmatpush1.msra.mxu0 0.0
  %228 = vmatprep.subr.mxu0 0.0
  %229 = vmatpush1.msra.mxu0 0.0
  %230 = vmatprep.subr.mxu0 0.0
  %231 = vmatpush1.msra.mxu0 0.0
  %232 = vmatprep.subr.mxu0 0.0
  %233 = vmatpush1.msra.mxu0 0.0
  %234 = vmatprep.subr.mxu0 0.0
  %235 = vmatpush1.msra.mxu0 0.0
  %236 = vmatprep.subr.mxu0 0.0
  %237 = vmatpush1.msra.mxu0 0.0
  %238 = vmatprep.subr.mxu0 0.0
  %239 = vmatpush1.msra.mxu0 0.0
  %240 = vmatprep.subr.mxu0 0.0
  %241 = vmatpush1.msra.mxu0 0.0
  %242 = vmatprep.subr.mxu0 0.0
  %243 = vmatpush1.msra.mxu0 0.0
  %244 = vmatprep.subr.mxu0 0.0
  %245 = vmatpush1.msra.mxu0 0.0
  %246 = vmatprep.subr.mxu0 0.0
  %247 = vmatpush1.msra.mxu0 0.0
  %248 = vmatprep.subr.mxu0 0.0
  %249 = vmatpush1.msra.mxu0 0.0
  %250 = vmatprep.subr.mxu0 0.0
  %251 = vmatpush1.msra.mxu0 0.0
  %252 = vmatprep.mubr.f32.mxu0 0.0
  %253 = vmatmul.mubr.f32.gmra.mrb[0].mxu0 %v177
  %v254 = vpop.f32.mrb[0].mxu0
  %v255 = vadd.f32 %v173, %v254
  %v256 = vpop.f32.mrb[0].mxu0
  %257 = vmatprep.mubr.f32.mxu0 0.0
  %258 = vmatmul.mubr.f32.gmra.mrb[0].mxu0 %v180
  %v259 = vpop.f32.mrb[0].mxu0
  %v260 = vadd.f32 %v173, %v259
  %v261 = vpop.f32.mrb[0].mxu0
  %262 = vmatprep.mubr.f32.mxu0 0.0
  %263 = vmatmul.mubr.f32.gmra.mrb[0].mxu0 %v183
  %v264 = vpop.f32.mrb[0].mxu0
  %v265 = vadd.f32 %v173, %v264
  %v266 = vpop.f32.mrb[0].mxu0
  %267 = vmatprep.mubr.f32.mxu0 0.0
  %268 = vmatmul.mubr.f32.gmra.mrb[0].mxu0 %v186
  %v269 = vpop.f32.mrb[0].mxu0
  %v270 = vadd.f32 %v173, %v269
  %v271 = vpop.f32.mrb[0].mxu0
  %272 = vdwg.mxu0
  %v273 = vtanh.pop %v255
  %v274 = vtanh.pop %v260
  %v275 = vtanh.pop %v265
  %v276 = vtanh.pop %v270
  %v277 = vld [vmem:[%s3] sm:$0xff]
  %v278 = vld [vmem:[%s3 + $0x8] sm:$0xff]
  %v280 = vsel %vm146, %v273, 0
  %v283 = vsel %vm146, %v274, 0
  %v286 = vsel %vm146, %v275, 0
  %v289 = vsel %vm146, %v276, 0
  %v292 = vsel %vm146, %v277, 0
  %v295 = vsel %vm146, %v278, 0
  %297 = vmatprep.subr.mxu0 0.0
  %298 = vmatpush1.xpose.msra.mxu0 %v292
  %299 = vmatprep.subr.mxu0 0.0
  %300 = vmatpush1.xpose.msra.mxu0 %v295
  %301 = vmatprep.subr.mxu0 0.0
  %302 = vmatpush1.xpose.msra.mxu0 0.0
  %303 = vmatprep.subr.mxu0 0.0
  %304 = vmatpush1.xpose.msra.mxu0 0.0
  %305 = vmatprep.subr.mxu0 0.0
  %306 = vmatpush1.xpose.msra.mxu0 0.0
  %307 = vmatprep.subr.mxu0 0.0
  %308 = vmatpush1.xpose.msra.mxu0 0.0
  %309 = vmatprep.subr.mxu0 0.0
  %310 = vmatpush1.xpose.msra.mxu0 0.0
  %311 = vmatprep.subr.mxu0 0.0
  %312 = vmatpush1.xpose.msra.mxu0 0.0
  %313 = vmatprep.subr.mxu0 0.0
  %314 = vmatpush1.xpose.msra.mxu0 0.0
  %315 = vmatprep.subr.mxu0 0.0
  %316 = vmatpush1.xpose.msra.mxu0 0.0
  %317 = vmatprep.subr.mxu0 0.0
  %318 = vmatpush1.xpose.msra.mxu0 0.0
  %319 = vmatprep.subr.mxu0 0.0
  %320 = vmatpush1.xpose.msra.mxu0 0.0
  %321 = vmatprep.subr.mxu0 0.0
  %322 = vmatpush1.xpose.msra.mxu0 0.0
  %323 = vmatprep.subr.mxu0 0.0
  %324 = vmatpush1.xpose.msra.mxu0 0.0
  %325 = vmatprep.subr.mxu0 0.0
  %326 = vmatpush1.xpose.msra.mxu0 0.0
  %327 = vmatprep.subr.mxu0 0.0
  %328 = vmatpush1.xpose.msra.mxu0 0.0
  %329 = vmatprep.subr.mxu0 0.0
  %330 = vmatpush1.xpose.msra.mxu0 0.0
  %331 = vmatprep.subr.mxu0 0.0
  %332 = vmatpush1.xpose.msra.mxu0 0.0
  %333 = vmatprep.subr.mxu0 0.0
  %334 = vmatpush1.xpose.msra.mxu0 0.0
  %335 = vmatprep.subr.mxu0 0.0
  %336 = vmatpush1.xpose.msra.mxu0 0.0
  %337 = vmatprep.subr.mxu0 0.0
  %338 = vmatpush1.xpose.msra.mxu0 0.0
  %339 = vmatprep.subr.mxu0 0.0
  %340 = vmatpush1.xpose.msra.mxu0 0.0
  %341 = vmatprep.subr.mxu0 0.0
  %342 = vmatpush1.xpose.msra.mxu0 0.0
  %343 = vmatprep.subr.mxu0 0.0
  %344 = vmatpush1.xpose.msra.mxu0 0.0
  %345 = vmatprep.subr.mxu0 0.0
  %346 = vmatpush1.xpose.msra.mxu0 0.0
  %347 = vmatprep.subr.mxu0 0.0
  %348 = vmatpush1.xpose.msra.mxu0 0.0
  %349 = vmatprep.subr.mxu0 0.0
  %350 = vmatpush1.xpose.msra.mxu0 0.0
  %351 = vmatprep.subr.mxu0 0.0
  %352 = vmatpush1.xpose.msra.mxu0 0.0
  %353 = vmatprep.subr.mxu0 0.0
  %354 = vmatpush1.xpose.msra.mxu0 0.0
  %355 = vmatprep.subr.mxu0 0.0
  %356 = vmatpush1.xpose.msra.mxu0 0.0
  %357 = vmatprep.subr.mxu0 0.0
  %358 = vmatpush1.xpose.msra.mxu0 0.0
  %359 = vmatprep.subr.mxu0 0.0
  %360 = vmatpush1.xpose.msra.mxu0 0.0
  %361 = vmatprep.mubr.f32.mxu0 0.0
  %362 = vmatmul.mubr.f32.gmra.mrb[0].mxu0 %v280
  %v363 = vpop.f32.mrb[0].mxu0
  %v364 = vadd.f32 0.0, %v363
  %v365 = vpop.f32.mrb[0].mxu0
  %366 = vmatprep.mubr.f32.mxu0 0.0
  %367 = vmatmul.mubr.f32.gmra.mrb[0].mxu0 %v283
  %v368 = vpop.f32.mrb[0].mxu0
  %v369 = vadd.f32 0.0, %v368
  %v370 = vpop.f32.mrb[0].mxu0
  %371 = vmatprep.mubr.f32.mxu0 0.0
  %372 = vmatmul.mubr.f32.gmra.mrb[0].mxu0 %v286
  %v373 = vpop.f32.mrb[0].mxu0
  %v374 = vadd.f32 0.0, %v373
  %v375 = vpop.f32.mrb[0].mxu0
  %376 = vmatprep.mubr.f32.mxu0 0.0
  %377 = vmatmul.mubr.f32.gmra.mrb[0].mxu0 %v289
  %v378 = vpop.f32.mrb[0].mxu0
  %v379 = vadd.f32 0.0, %v378
  %v380 = vpop.f32.mrb[0].mxu0
  %381 = vdwg.mxu0
  %vm382 = vcmask 64512
  %v383 = vsel %vm382, %v364, -inf
  %v384 = vsel %vm382, %v369, -inf
  %v385 = vmax.f32 %v383, %v384
  %v386 = vrot.slane %v385, 4
  %v387 = vmax.f32 %v385, %v386
  %v388 = vrot.slane %v387, 2
  %v389 = vmax.f32 %v387, %v388
  %v390 = vrot.slane %v389, 1
  %v391 = vmax.f32 %v389, %v390
  %v392 = vsel %vm382, %v374, -inf
  %v393 = vsel %vm382, %v379, -inf
  %v394 = vmax.f32 %v392, %v393
  %v395 = vrot.slane %v394, 4
  %v396 = vmax.f32 %v394, %v395
  %v397 = vrot.slane %v396, 2
  %v398 = vmax.f32 %v396, %v397
  %v399 = vrot.slane %v398, 1
  %v400 = vmax.f32 %v398, %v399
  %v401 = vsub.f32 %v364, %v391
  %v402 = vsub.f32 %v369, %v391
  %v403 = vsub.f32 %v374, %v400
  %v404 = vsub.f32 %v379, %v400
  %v405 = vmul.f32 %v401, 1.442695
  %v406 = vpow.pop %v405
  %v407 = vmul.f32 %v402, 1.442695
  %v408 = vpow.pop %v407
  %v409 = vmul.f32 %v403, 1.442695
  %v410 = vpow.pop %v409
  %v411 = vmul.f32 %v404, 1.442695
  %v412 = vpow.pop %v411
  %v413 = vsel %vm382, %v406, 0.0
  %v414 = vsel %vm382, %v408, 0.0
  %v415 = vadd.f32 %v413, %v414
  %v416 = vrot.slane %v415, 4
  %v417 = vadd.f32 %v415, %v416
  %v418 = vrot.slane %v417, 2
  %v419 = vadd.f32 %v417, %v418
  %v420 = vrot.slane %v419, 1
  %v421 = vadd.f32 %v419, %v420
  %v422 = vsel %vm382, %v410, 0.0
  %v423 = vsel %vm382, %v412, 0.0
  %v424 = vadd.f32 %v422, %v423
  %v425 = vrot.slane %v424, 4
  %v426 = vadd.f32 %v424, %v425
  %v427 = vrot.slane %v426, 2
  %v428 = vadd.f32 %v426, %v427
  %v429 = vrot.slane %v428, 1
  %v430 = vadd.f32 %v428, %v429
  %v431 = vrcp.pop %v421
  %v432 = vmul.f32 %v406, %v431
  %v433 = vmul.f32 %v408, %v431
  %v434 = vrcp.pop %v430
  %v435 = vmul.f32 %v410, %v434
  %v436 = vmul.f32 %v412, %v434
  %441 = vrot.lane.b32.xlu0 %v364, 120
  %v442 = vpop.permute.xlu0 %441
  %443 = vrot.lane.b32.xlu0 %v369, 120
  %v444 = vpop.permute.xlu0 %443
  %445 = vrot.lane.b32.xlu0 %v374, 120
  %v446 = vpop.permute.xlu0 %445
  %447 = vrot.lane.b32.xlu0 %v379, 120
  %v448 = vpop.permute.xlu0 %447
  %v453 = vmul.f32 %v432, %v442
  %v454 = vmul.f32 %v433, %v444
  %v455 = vmul.f32 %v435, %v446
  %v456 = vmul.f32 %v436, %v448
  %v457 = vsel %vm382, %v453, 0.0
  %v458 = vsel %vm382, %v454, 0.0
  %v459 = vadd.f32 %v457, %v458
  %v460 = vrot.slane %v459, 4
  %v461 = vadd.f32 %v459, %v460
  %v462 = vrot.slane %v461, 2
  %v463 = vadd.f32 %v461, %v462
  %v464 = vrot.slane %v463, 1
  %v465 = vadd.f32 %v463, %v464
  %v466 = vsel %vm382, %v455, 0.0
  %v467 = vsel %vm382, %v456, 0.0
  %v468 = vadd.f32 %v466, %v467
  %v469 = vrot.slane %v468, 4
  %v470 = vadd.f32 %v468, %v469
  %v471 = vrot.slane %v470, 2
  %v472 = vadd.f32 %v470, %v471
  %v473 = vrot.slane %v472, 1
  %v474 = vadd.f32 %v472, %v473
  %v475 = vld [vmem:[%s4] sm:$0x1]
  %v477 = vlaneseq
  %v478 = vshrl.u32 %v477, 7
  %v479 = vsub.s32 0, %v478
  %v480 = vrot.slane %v475, %v479
  %v482 = vadd.f32 %v465, %v480
  %v483 = vadd.f32 %v474, %v480
  %v484 = vld [vmem:[%s5] sm:$0x3]
  %v485 = vmax.f32 %v482, 0.0
  %v486 = vmax.f32 %v483, 0.0
  %v488 = vrot.slane %v484, 1
  %v491 = vmul.f32 %v482, %v484
  %v492 = vmul.f32 %v483, %v488
  %v493 = vsub.f32 %v485, %v491
  %v494 = vsub.f32 %v486, %v492
  %v495 = vand.u32 2147483647, %v482
  %v496 = vand.u32 2147483647, %v483
  %v497 = vsub.f32 0.0, %v495
  %v498 = vsub.f32 0.0, %v496
  %v499 = vmul.f32 %v497, 1.442695
  %v500 = vpow.pop %v499
  %v501 = vmul.f32 %v498, 1.442695
  %v502 = vpow.pop %v501
  %v503 = vadd.f32 %v500, 1.0
  %v504 = vlog2.pop %v503
  %v505 = vmul.f32 %v504, 0.6931472
  %v506 = vmul.f32 -0.5, %v500
  %v507 = vadd.f32 %v506, 1.0
  %v508 = vmul.f32 %v507, %v500
  %v509 = vand.u32 2147483647, %v500
  %vm510 = vcmp.lt.f32.partialorder %v509, 0.0004427343
  %v511 = vsel %vm510, %v508, %v505
  %v512 = vadd.f32 %v502, 1.0
  %v513 = vlog2.pop %v512
  %v514 = vmul.f32 %v513, 0.6931472
  %v515 = vmul.f32 -0.5, %v502
  %v516 = vadd.f32 %v515, 1.0
  %v517 = vmul.f32 %v516, %v502
  %v518 = vand.u32 2147483647, %v502
  %vm519 = vcmp.lt.f32.partialorder %v518, 0.0004427343
  %v520 = vsel %vm519, %v517, %v514
  %v521 = vadd.f32 %v493, %v511
  %v522 = vadd.f32 %v494, %v520
  %v525 = vrot.slane %v483, 7
  %vm526 = vcmask 1041409
  %v527 = vsel %vm526, %v525, %v482
  %v531 = vrot.slane %v521, 6
  %v532 = vrot.slane %v522, 5
  %vm533 = vcmask 1043459
  %v534 = vsel %vm533, %v532, %v531
  %vm536 = vcmask 1041408
  %v537 = vsel %vm536, %v527, %v534
  %vm538 = vcmask 60416
  %539 = vst.msk [vmem:[%s6] sm:$0xf] %vm538, %v537
  // Predicated region
  $region26: #{cnn_forward.1} parent=0 // pred_check
    _
  $region27: #{cnn_forward.1} parent=0 // pred_check_branch
    %541 = sbr.rel (0) target = $region29
  $region28: #{cnn_forward.1} parent=0 // pred_region
    _
  $region29: #{cnn_forward.1} parent=0 // pred_fallthru
    _
  // Predicated region
  $region30: #{cnn_forward.1} parent=0 // pred_check
    _
  $region31: #{cnn_forward.1} parent=0 // pred_check_branch
    %543 = sbr.rel (0) target = $region33
  $region32: #{cnn_forward.1} parent=0 // pred_region
    _
  $region33: #{cnn_forward.1} parent=0 // pred_fallthru
    _

</llo_original>
